<compile_context>
chip_gen: v6e
topology: v6e:2x2x1
jax: 0.10.0
libtpu: 0.0.40
codegen_flags: <defaults>
</compile_context>

<pallas_src>
import functools

import jax
import jax.numpy as jnp
from jax.experimental import pallas as pl
from jax.experimental.pallas import tpu as pltpu


def _round_up(v, m):
    return (v + m - 1) // m * m


def _cdiv(a, b):
    return (a + b - 1) // b


def _vmem_budget_bytes():
    """~75% of this generation's physical VMEM (v7x-safe fallback)."""
    phys = 64 << 20                       # v7x physical VMEM (smallest gen)
    try:
        phys = int(pltpu.get_tpu_info().vmem_capacity_bytes)
    except Exception:
        pass                              # query unavailable -> stay v7x-safe
    return max((phys * 3) // 4, 16 << 20)


# ---------------------------------------------------------------------------
# Fused kernel: tiled global-avg-pool accumulation + 2-layer MLP at last step
# ---------------------------------------------------------------------------
def _fc_fused_kernel(x_ref, w1_ref, b1_ref, w2_ref, b2_ref, o_ref, acc_ref,
                     *, inv_hw):
    k = pl.program_id(0)

    @pl.when(k == 0)
    def _init():
        acc_ref[...] = jnp.zeros_like(acc_ref)

    # Partial sum over this H*W block, produced directly as a lane-dense
    # (1, NC_pad) row:  ones(1, T) . x_block(NC_pad, T)^T   (MXU, f32 acc).
    x_blk = x_ref[...].astype(jnp.float32)                    # (NC_pad, T)
    ones_row = jnp.ones((1, x_blk.shape[1]), jnp.float32)     # (1, T)
    acc_ref[...] += jax.lax.dot_general(
        ones_row, x_blk,
        dimension_numbers=(((1,), (1,)), ((), ())),
        preferred_element_type=jnp.float32)                   # (1, NC_pad)

    @pl.when(k == pl.num_programs(0) - 1)
    def _finalize():
        pooled = acc_ref[...] * inv_hw                        # (1, NC_pad) f32
        h = jnp.dot(pooled, w1_ref[...],
                    preferred_element_type=jnp.float32) + b1_ref[...]
        h = jnp.maximum(h, 0.0)                               # ReLU, (1, Cc_pad)
        y = jnp.dot(h, w2_ref[...],
                    preferred_element_type=jnp.float32) + b2_ref[...]
        o_ref[...] = y                                        # (1, Co_pad)


# ---------------------------------------------------------------------------
# Wrapper: pad to TPU-friendly shapes, size blocks by bytes, launch kernel
# ---------------------------------------------------------------------------
def fc_forward(x, params, *, tile_hw=None, target_block_bytes=4 << 20,
               single_buffer_consts=True):
    n, c, h, w = x.shape
    w1, b1, w2, b2 = params["w1"], params["b1"], params["w2"], params["b2"]
    cin, cc = w1.shape
    cc2, co = w2.shape
    assert cin == n * c, "FC.forward: x.view(1,-1) length must equal channel_in"
    assert cc2 == cc

    nc, hw = n * c, h * w
    nc_pad = _round_up(nc, 8)
    cc_pad = _round_up(cc, 128)
    co_pad = _round_up(co, 128)

    # ---- generation-aware VMEM budget & byte-sized x blocks ---------------
    vmem_budget = _vmem_budget_bytes()
    lane_hw = _round_up(hw, 128)                   # minimum lane-padded width
    x_row_bytes = nc_pad * x.dtype.itemsize        # bytes per lane column

    # Non-streamed VMEM (weights/biases/output/acc), counted at 2 buffers to
    # stay conservative even without Buffered(1).
    const_bytes = 2 * 4 * (nc_pad * cc_pad + cc_pad * co_pad
                           + cc_pad + co_pad + co_pad + nc_pad)
    avail_for_x = max(vmem_budget - const_bytes - (2 << 20), 4 << 20)
    per_buf_cap = avail_for_x // 2                 # x stream is double-buffered

    if tile_hw is not None:
        tile = min(_round_up(int(tile_hw), 128), lane_hw)
    elif x_row_bytes * lane_hw <= per_buf_cap:
        tile = lane_hw                             # whole H*W -> 1-step grid
    else:
        target = int(min(max(target_block_bytes, 2 << 20), per_buf_cap))
        max_lanes = max((target // x_row_bytes) // 128 * 128, 128)
        steps = _cdiv(lane_hw, max_lanes)
        tile = min(_round_up(_cdiv(lane_hw, steps), 128), lane_hw)

    num_tiles = _cdiv(hw, tile)
    hw_pad = num_tiles * tile

    # 2-D view of the input + zero padding (zeros are neutral for the sum).
    x2d = x.reshape(nc, hw)
    if (nc_pad, hw_pad) != (nc, hw):
        x2d = jnp.pad(x2d, ((0, nc_pad - nc), (0, hw_pad - hw)))

    def _pad2(a, rows, cols):
        return jnp.pad(a, ((0, rows - a.shape[0]), (0, cols - a.shape[1])))

    # Full f32 weights/biases: fetched once, so bf16 would save nothing.
    w1p = _pad2(w1.astype(jnp.float32), nc_pad, cc_pad)
    w2p = _pad2(w2.astype(jnp.float32), cc_pad, co_pad)
    b1p = _pad2(b1.reshape(1, -1).astype(jnp.float32), 1, cc_pad)
    b2p = _pad2(b2.reshape(1, -1).astype(jnp.float32), 1, co_pad)

    # Explicit VMEM limit: double-buffered x stream + (single-buffered)
    # resident f32 weights + biases/output/accumulator, plus headroom.
    w_bufs = 1 if single_buffer_consts else 2
    est = (2 * nc_pad * tile * x.dtype.itemsize
           + w_bufs * 4 * (nc_pad * cc_pad + cc_pad * co_pad + cc_pad + co_pad)
           + 2 * co_pad * 4
           + nc_pad * 4
           + (2 << 20))
    vmem_limit = int(min(max(est, 8 << 20), vmem_budget))

    if single_buffer_consts:
        def _const_spec(shape):
            return pl.BlockSpec(shape, lambda k: (0, 0),
                                pipeline_mode=pl.Buffered(1))
    else:
        def _const_spec(shape):
            return pl.BlockSpec(shape, lambda k: (0, 0))

    kernel = functools.partial(_fc_fused_kernel, inv_hw=1.0 / float(hw))

    out_pad = pl.pallas_call(
        kernel,
        out_shape=jax.ShapeDtypeStruct((1, co_pad), jnp.float32),
        grid_spec=pltpu.PrefetchScalarGridSpec(
            num_scalar_prefetch=0,
            grid=(num_tiles,),
            in_specs=[
                pl.BlockSpec((nc_pad, tile), lambda k: (0, k)),     # x stream
                _const_spec((nc_pad, cc_pad)),                      # w1 (resident)
                _const_spec((1, cc_pad)),                           # b1
                _const_spec((cc_pad, co_pad)),                      # w2 (resident)
                _const_spec((1, co_pad)),                           # b2
            ],
            out_specs=pl.BlockSpec((1, co_pad), lambda k: (0, 0)),
            scratch_shapes=[pltpu.VMEM((1, nc_pad), jnp.float32)],  # pooled acc
        ),
        compiler_params=pltpu.CompilerParams(
            dimension_semantics=("arbitrary",),     # reduction over H*W blocks
            vmem_limit_bytes=vmem_limit,
        ),
    )(x2d, w1p, b1p, w2p, b2p)

    return out_pad[:, :co]


def init_params(key, channel_in, channel_center, channel_out):
    k1, k2, k3, k4 = jax.random.split(key, 4)
    bound1 = 1.0 / jnp.sqrt(channel_in)
    bound2 = 1.0 / jnp.sqrt(channel_center)
    return {
        "w1": jax.random.uniform(k1, (channel_in, channel_center),
                                 jnp.float32, -bound1, bound1),
        "b1": jax.random.uniform(k2, (channel_center,),
                                 jnp.float32, -bound1, bound1),
        "w2": jax.random.uniform(k3, (channel_center, channel_out),
                                 jnp.float32, -bound2, bound2),
        "b2": jax.random.uniform(k4, (channel_out,),
                                 jnp.float32, -bound2, bound2),
    }


if __name__ == "__main__":
    # Small shapes: x.view(1, -1) implies channel_in == N * C
    N, C, H, W = 2, 4, 16, 16
    channel_in = N * C          # 8
    channel_center = 32
    channel_out = 16

    key = jax.random.PRNGKey(0)
    kx, kp = jax.random.split(key)
    x = jax.random.normal(kx, (N, C, H, W), dtype=jnp.float32)
    params = init_params(kp, channel_in, channel_center, channel_out)

    def _run(single_buffer_consts):
        fn = jax.jit(functools.partial(
            fc_forward, single_buffer_consts=single_buffer_consts))
        return jax.block_until_ready(fn(x, params))

    try:
        out = _run(True)
    except Exception:
        # Fallback for builds where pl.Buffered(1) on pallas_call specs is not
        # supported; only costs a double-buffered copy of the tiny constants.
        out = _run(False)

    # Pure-JAX f32 reference (module semantics); kernel is f32 end-to-end.
    pooled_ref = jnp.mean(x, axis=(2, 3)).reshape(1, -1)
    h_ref = jnp.maximum(pooled_ref @ params["w1"] + params["b1"][None, :], 0.0)
    ref = h_ref @ params["w2"] + params["b2"][None, :]

    assert out.shape == (1, channel_out)
    assert jnp.allclose(out, ref, atol=2e-3, rtol=2e-3), (
        f"max abs diff = {jnp.max(jnp.abs(out - ref))}")

    print("KERNEL_OK")
</pallas_src>

<mosaic_0001>
module attributes {stable_mosaic.version = 11 : i64} {
  func.func @_fc_fused_kernel(%arg0: i32, %arg1: memref<8x256xf32, #tpu.memory_space<vmem>>, %arg2: memref<8x128xf32, #tpu.memory_space<vmem>>, %arg3: memref<1x128xf32, #tpu.memory_space<vmem>>, %arg4: memref<128x128xf32, #tpu.memory_space<vmem>>, %arg5: memref<1x128xf32, #tpu.memory_space<vmem>>, %arg6: memref<1x128xf32, #tpu.memory_space<vmem>>, %arg7: memref<1x8xf32, #tpu.memory_space<vmem>>) attributes {dimension_semantics = [#tpu.dimension_semantics<arbitrary>], iteration_bounds = array<i64: 1>, scalar_prefetch = 0 : i64, scratch_operands = 1 : i64, tpu.core_type = #tpu.core_type<tc>, window_params = [{transform_indices = @transform_0, window_bounds = array<i64: 8, 256>}, {pipeline_mode = #tpu.pipeline_mode<synchronous>, transform_indices = @transform_1, window_bounds = array<i64: 8, 128>}, {pipeline_mode = #tpu.pipeline_mode<synchronous>, transform_indices = @transform_2, window_bounds = array<i64: 1, 128>}, {pipeline_mode = #tpu.pipeline_mode<synchronous>, transform_indices = @transform_3, window_bounds = array<i64: 128, 128>}, {pipeline_mode = #tpu.pipeline_mode<synchronous>, transform_indices = @transform_4, window_bounds = array<i64: 1, 128>}, {pipeline_mode = #tpu.pipeline_mode<synchronous>, transform_indices = @transform_5, window_bounds = array<i64: 1, 128>}]} {
    %c0_i32 = arith.constant 0 : i32
    %0 = arith.cmpi eq, %arg0, %c0_i32 : i32
    %1 = arith.extui %0 : i1 to i32
    %c0_i32_0 = arith.constant 0 : i32
    %2 = arith.cmpi ne, %1, %c0_i32_0 : i32
    scf.if %2 {
      %cst_9 = arith.constant 0.000000e+00 : f32
      %12 = vector.broadcast %cst_9 : f32 to vector<1x8xf32>
      %c0_10 = arith.constant 0 : index
      %c0_11 = arith.constant 0 : index
      %13 = vector.load %arg7[%c0_10, %c0_11] : memref<1x8xf32, #tpu.memory_space<vmem>>, vector<1x8xf32>
      tpu.vector_store %arg7[%c0_10, %c0_11], %12 {strides = array<i32>} : memref<1x8xf32, #tpu.memory_space<vmem>>, vector<1x8xf32>,
    } else {
    }
    %c0 = arith.constant 0 : index
    %c0_1 = arith.constant 0 : index
    %3 = vector.load %arg1[%c0, %c0_1] : memref<8x256xf32, #tpu.memory_space<vmem>>, vector<8x256xf32>
    %cst = arith.constant 1.000000e+00 : f32
    %4 = vector.broadcast %cst : f32 to vector<1x256xf32>
    %c0_2 = arith.constant 0 : index
    %c0_3 = arith.constant 0 : index
    %5 = vector.load %arg7[%c0_2, %c0_3] : memref<1x8xf32, #tpu.memory_space<vmem>>, vector<1x8xf32>
    %cst_4 = arith.constant dense<0.000000e+00> : vector<1x8xf32>
    %6 = tpu.matmul %4, %3, %cst_4 {dimension_numbers = #tpu.dot_dimension_numbers<[1], [1], [0], [0], [0, 0, 1, 0], [], []>} : vector<1x256xf32>, vector<8x256xf32>, vector<1x8xf32> -> vector<1x8xf32>
    %7 = arith.addf %5, %6 : vector<1x8xf32>
    %c0_5 = arith.constant 0 : index
    %c0_6 = arith.constant 0 : index
    %8 = vector.load %arg7[%c0_5, %c0_6] : memref<1x8xf32, #tpu.memory_space<vmem>>, vector<1x8xf32>
    tpu.vector_store %arg7[%c0_5, %c0_6], %7 {strides = array<i32>} : memref<1x8xf32, #tpu.memory_space<vmem>>, vector<1x8xf32>,
    %c0_i32_7 = arith.constant 0 : i32
    %9 = arith.cmpi eq, %arg0, %c0_i32_7 : i32
    %10 = arith.extui %9 : i1 to i32
    %c0_i32_8 = arith.constant 0 : i32
    %11 = arith.cmpi ne, %10, %c0_i32_8 : i32
    scf.if %11 {
      %c0_9 = arith.constant 0 : index
      %c0_10 = arith.constant 0 : index
      %12 = vector.load %arg7[%c0_9, %c0_10] : memref<1x8xf32, #tpu.memory_space<vmem>>, vector<1x8xf32>
      %cst_11 = arith.constant 3.906250e-03 : f32
      %13 = vector.broadcast %cst_11 : f32 to vector<1x8xf32>
      %14 = arith.mulf %12, %13 : vector<1x8xf32>
      %c0_12 = arith.constant 0 : index
      %c0_13 = arith.constant 0 : index
      %15 = vector.load %arg2[%c0_12, %c0_13] : memref<8x128xf32, #tpu.memory_space<vmem>>, vector<8x128xf32>
      %cst_14 = arith.constant dense<0.000000e+00> : vector<1x128xf32>
      %16 = tpu.matmul %14, %15, %cst_14 {dimension_numbers = #tpu.dot_dimension_numbers<[1], [0], [0], [1], [0, 0, 1, 1], [], []>} : vector<1x8xf32>, vector<8x128xf32>, vector<1x128xf32> -> vector<1x128xf32>
      %c0_15 = arith.constant 0 : index
      %c0_16 = arith.constant 0 : index
      %17 = vector.load %arg3[%c0_15, %c0_16] : memref<1x128xf32, #tpu.memory_space<vmem>>, vector<1x128xf32>
      %18 = arith.addf %16, %17 : vector<1x128xf32>
      %cst_17 = arith.constant 0.000000e+00 : f32
      %19 = vector.broadcast %cst_17 : f32 to vector<1x128xf32>
      %20 = arith.maximumf %18, %19 : vector<1x128xf32>
      %c0_18 = arith.constant 0 : index
      %c0_19 = arith.constant 0 : index
      %21 = vector.load %arg4[%c0_18, %c0_19] : memref<128x128xf32, #tpu.memory_space<vmem>>, vector<128x128xf32>
      %cst_20 = arith.constant dense<0.000000e+00> : vector<1x128xf32>
      %22 = tpu.matmul %20, %21, %cst_20 {dimension_numbers = #tpu.dot_dimension_numbers<[1], [0], [0], [1], [0, 0, 1, 1], [], []>} : vector<1x128xf32>, vector<128x128xf32>, vector<1x128xf32> -> vector<1x128xf32>
      %c0_21 = arith.constant 0 : index
      %c0_22 = arith.constant 0 : index
      %23 = vector.load %arg5[%c0_21, %c0_22] : memref<1x128xf32, #tpu.memory_space<vmem>>, vector<1x128xf32>
      %24 = arith.addf %22, %23 : vector<1x128xf32>
      %c0_23 = arith.constant 0 : index
      %c0_24 = arith.constant 0 : index
      %25 = vector.load %arg6[%c0_23, %c0_24] : memref<1x128xf32, #tpu.memory_space<vmem>>, vector<1x128xf32>
      tpu.vector_store %arg6[%c0_23, %c0_24], %24 {strides = array<i32>} : memref<1x128xf32, #tpu.memory_space<vmem>>, vector<1x128xf32>,
    } else {
    }
    return
  }
  func.func @transform_0(%arg0: i32) -> (i32, i32) {
    %c0_i32 = arith.constant 0 : i32
    %c0_i32_0 = arith.constant 0 : i32
    return %c0_i32, %arg0 : i32, i32
  }
  func.func @transform_1(%arg0: i32) -> (i32, i32) {
    %c0_i32 = arith.constant 0 : i32
    %c0_i32_0 = arith.constant 0 : i32
    %c0_i32_1 = arith.constant 0 : i32
    return %c0_i32, %c0_i32_0 : i32, i32
  }
  func.func @transform_2(%arg0: i32) -> (i32, i32) {
    %c0_i32 = arith.constant 0 : i32
    %c0_i32_0 = arith.constant 0 : i32
    %c0_i32_1 = arith.constant 0 : i32
    return %c0_i32, %c0_i32_0 : i32, i32
  }
  func.func @transform_3(%arg0: i32) -> (i32, i32) {
    %c0_i32 = arith.constant 0 : i32
    %c0_i32_0 = arith.constant 0 : i32
    %c0_i32_1 = arith.constant 0 : i32
    return %c0_i32, %c0_i32_0 : i32, i32
  }
  func.func @transform_4(%arg0: i32) -> (i32, i32) {
    %c0_i32 = arith.constant 0 : i32
    %c0_i32_0 = arith.constant 0 : i32
    %c0_i32_1 = arith.constant 0 : i32
    return %c0_i32, %c0_i32_0 : i32, i32
  }
  func.func @transform_5(%arg0: i32) -> (i32, i32) {
    %c0_i32 = arith.constant 0 : i32
    %c0_i32_0 = arith.constant 0 : i32
    %c0_i32_1 = arith.constant 0 : i32
    return %c0_i32, %c0_i32_0 : i32, i32
  }
}

module attributes {stable_mosaic.version = 11 : i64} {
  func.func @_fc_fused_kernel(%arg0: i32, %arg1: memref<8x256xf32, #tpu.memory_space<vmem>>, %arg2: memref<8x128xf32, #tpu.memory_space<vmem>>, %arg3: memref<1x128xf32, #tpu.memory_space<vmem>>, %arg4: memref<128x128xf32, #tpu.memory_space<vmem>>, %arg5: memref<1x128xf32, #tpu.memory_space<vmem>>, %arg6: memref<1x128xf32, #tpu.memory_space<vmem>>, %arg7: memref<1x8xf32, #tpu.memory_space<vmem>>) attributes {dimension_semantics = [#tpu.dimension_semantics<arbitrary>], iteration_bounds = array<i64: 1>, scalar_prefetch = 0 : i64, scratch_operands = 1 : i64, tpu.core_type = #tpu.core_type<tc>, window_params = [{transform_indices = @transform_0, window_bounds = array<i64: 8, 256>}, {pipeline_mode = #tpu.pipeline_mode<synchronous>, transform_indices = @transform_1, window_bounds = array<i64: 8, 128>}, {pipeline_mode = #tpu.pipeline_mode<synchronous>, transform_indices = @transform_2, window_bounds = array<i64: 1, 128>}, {pipeline_mode = #tpu.pipeline_mode<synchronous>, transform_indices = @transform_3, window_bounds = array<i64: 128, 128>}, {pipeline_mode = #tpu.pipeline_mode<synchronous>, transform_indices = @transform_4, window_bounds = array<i64: 1, 128>}, {pipeline_mode = #tpu.pipeline_mode<synchronous>, transform_indices = @transform_5, window_bounds = array<i64: 1, 128>}]} {
    %c0_i32 = arith.constant 0 : i32
    %0 = arith.cmpi eq, %arg0, %c0_i32 : i32
    %1 = arith.extui %0 : i1 to i32
    %c0_i32_0 = arith.constant 0 : i32
    %2 = arith.cmpi ne, %1, %c0_i32_0 : i32
    scf.if %2 {
      %cst_9 = arith.constant 0.000000e+00 : f32
      %12 = vector.broadcast %cst_9 : f32 to vector<1x8xf32>
      %c0_10 = arith.constant 0 : index
      %c0_11 = arith.constant 0 : index
      %13 = vector.load %arg7[%c0_10, %c0_11] : memref<1x8xf32, #tpu.memory_space<vmem>>, vector<1x8xf32>
      tpu.vector_store %arg7[%c0_10, %c0_11], %12 {strides = array<i32>} : memref<1x8xf32, #tpu.memory_space<vmem>>, vector<1x8xf32>,
    } else {
    }
    %c0 = arith.constant 0 : index
    %c0_1 = arith.constant 0 : index
    %3 = vector.load %arg1[%c0, %c0_1] : memref<8x256xf32, #tpu.memory_space<vmem>>, vector<8x256xf32>
    %cst = arith.constant 1.000000e+00 : f32
    %4 = vector.broadcast %cst : f32 to vector<1x256xf32>
    %c0_2 = arith.constant 0 : index
    %c0_3 = arith.constant 0 : index
    %5 = vector.load %arg7[%c0_2, %c0_3] : memref<1x8xf32, #tpu.memory_space<vmem>>, vector<1x8xf32>
    %cst_4 = arith.constant dense<0.000000e+00> : vector<1x8xf32>
    %6 = tpu.matmul %4, %3, %cst_4 {dimension_numbers = #tpu.dot_dimension_numbers<[1], [1], [0], [0], [0, 0, 1, 0], [], []>} : vector<1x256xf32>, vector<8x256xf32>, vector<1x8xf32> -> vector<1x8xf32>
    %7 = arith.addf %5, %6 : vector<1x8xf32>
    %c0_5 = arith.constant 0 : index
    %c0_6 = arith.constant 0 : index
    %8 = vector.load %arg7[%c0_5, %c0_6] : memref<1x8xf32, #tpu.memory_space<vmem>>, vector<1x8xf32>
    tpu.vector_store %arg7[%c0_5, %c0_6], %7 {strides = array<i32>} : memref<1x8xf32, #tpu.memory_space<vmem>>, vector<1x8xf32>,
    %c0_i32_7 = arith.constant 0 : i32
    %9 = arith.cmpi eq, %arg0, %c0_i32_7 : i32
    %10 = arith.extui %9 : i1 to i32
    %c0_i32_8 = arith.constant 0 : i32
    %11 = arith.cmpi ne, %10, %c0_i32_8 : i32
    scf.if %11 {
      %c0_9 = arith.constant 0 : index
      %c0_10 = arith.constant 0 : index
      %12 = vector.load %arg7[%c0_9, %c0_10] : memref<1x8xf32, #tpu.memory_space<vmem>>, vector<1x8xf32>
      %cst_11 = arith.constant 3.906250e-03 : f32
      %13 = vector.broadcast %cst_11 : f32 to vector<1x8xf32>
      %14 = arith.mulf %12, %13 : vector<1x8xf32>
      %c0_12 = arith.constant 0 : index
      %c0_13 = arith.constant 0 : index
      %15 = vector.load %arg2[%c0_12, %c0_13] : memref<8x128xf32, #tpu.memory_space<vmem>>, vector<8x128xf32>
      %cst_14 = arith.constant dense<0.000000e+00> : vector<1x128xf32>
      %16 = tpu.matmul %14, %15, %cst_14 {dimension_numbers = #tpu.dot_dimension_numbers<[1], [0], [0], [1], [0, 0, 1, 1], [], []>} : vector<1x8xf32>, vector<8x128xf32>, vector<1x128xf32> -> vector<1x128xf32>
      %c0_15 = arith.constant 0 : index
      %c0_16 = arith.constant 0 : index
      %17 = vector.load %arg3[%c0_15, %c0_16] : memref<1x128xf32, #tpu.memory_space<vmem>>, vector<1x128xf32>
      %18 = arith.addf %16, %17 : vector<1x128xf32>
      %cst_17 = arith.constant 0.000000e+00 : f32
      %19 = vector.broadcast %cst_17 : f32 to vector<1x128xf32>
      %20 = arith.maximumf %18, %19 : vector<1x128xf32>
      %c0_18 = arith.constant 0 : index
      %c0_19 = arith.constant 0 : index
      %21 = vector.load %arg4[%c0_18, %c0_19] : memref<128x128xf32, #tpu.memory_space<vmem>>, vector<128x128xf32>
      %cst_20 = arith.constant dense<0.000000e+00> : vector<1x128xf32>
      %22 = tpu.matmul %20, %21, %cst_20 {dimension_numbers = #tpu.dot_dimension_numbers<[1], [0], [0], [1], [0, 0, 1, 1], [], []>} : vector<1x128xf32>, vector<128x128xf32>, vector<1x128xf32> -> vector<1x128xf32>
      %c0_21 = arith.constant 0 : index
      %c0_22 = arith.constant 0 : index
      %23 = vector.load %arg5[%c0_21, %c0_22] : memref<1x128xf32, #tpu.memory_space<vmem>>, vector<1x128xf32>
      %24 = arith.addf %22, %23 : vector<1x128xf32>
      %c0_23 = arith.constant 0 : index
      %c0_24 = arith.constant 0 : index
      %25 = vector.load %arg6[%c0_23, %c0_24] : memref<1x128xf32, #tpu.memory_space<vmem>>, vector<1x128xf32>
      tpu.vector_store %arg6[%c0_23, %c0_24], %24 {strides = array<i32>} : memref<1x128xf32, #tpu.memory_space<vmem>>, vector<1x128xf32>,
    } else {
    }
    return
  }
  func.func @transform_0(%arg0: i32) -> (i32, i32) {
    %c0_i32 = arith.constant 0 : i32
    %c0_i32_0 = arith.constant 0 : i32
    return %c0_i32, %arg0 : i32, i32
  }
  func.func @transform_1(%arg0: i32) -> (i32, i32) {
    %c0_i32 = arith.constant 0 : i32
    %c0_i32_0 = arith.constant 0 : i32
    %c0_i32_1 = arith.constant 0 : i32
    return %c0_i32, %c0_i32_0 : i32, i32
  }
  func.func @transform_2(%arg0: i32) -> (i32, i32) {
    %c0_i32 = arith.constant 0 : i32
    %c0_i32_0 = arith.constant 0 : i32
    %c0_i32_1 = arith.constant 0 : i32
    return %c0_i32, %c0_i32_0 : i32, i32
  }
  func.func @transform_3(%arg0: i32) -> (i32, i32) {
    %c0_i32 = arith.constant 0 : i32
    %c0_i32_0 = arith.constant 0 : i32
    %c0_i32_1 = arith.constant 0 : i32
    return %c0_i32, %c0_i32_0 : i32, i32
  }
  func.func @transform_4(%arg0: i32) -> (i32, i32) {
    %c0_i32 = arith.constant 0 : i32
    %c0_i32_0 = arith.constant 0 : i32
    %c0_i32_1 = arith.constant 0 : i32
    return %c0_i32, %c0_i32_0 : i32, i32
  }
  func.func @transform_5(%arg0: i32) -> (i32, i32) {
    %c0_i32 = arith.constant 0 : i32
    %c0_i32_0 = arith.constant 0 : i32
    %c0_i32_1 = arith.constant 0 : i32
    return %c0_i32, %c0_i32_0 : i32, i32
  }
}

</mosaic_0001>

<llo_original>
// kernel: fc_forward.1
$region0: #{fc_forward.1}
  #allocation0 [shape = 'u32[]', space=smem, size = 0x4, offset = 0x4, fixed_abs, tag = 'smem constant byte address 0x4 - core index']
  #allocation1 [shape = 'u32[144,128]{1,0:T(1,128)}', space=vmem, size = 0x12000, scoped, tag = 'internal scratch']
  #allocation2 [shape = 'f32[1,8]{1,0:T(1,128)}', space=vmem, size = 0x200, scoped, tag = 'scratch operand']
  %s0 = inlined_call_operand.vmem [shape: f32[8,256], index: 0, kind: input, shape index: {}]
  %s1 = inlined_call_operand.vmem [shape: f32[8,128], index: 1, kind: input, shape index: {}]
  %s2 = inlined_call_operand.vmem [shape: f32[1,128], index: 2, kind: input, shape index: {}]
  %s3 = inlined_call_operand.vmem [shape: f32[128,128], index: 3, kind: input, shape index: {}]
  %s4 = inlined_call_operand.vmem [shape: f32[1,128], index: 4, kind: input, shape index: {}]
  %s5 = inlined_call_operand.hbm [shape: f32[1,128], index: 5, kind: output, shape index: {}]
  %s6 = sld [smem:[#allocation0]]
  $region38: #{fc_forward.1} parent=0
    _
  %s8 = ssub.s32 1, %s6
  %s9 = scalar_select 0, %s8, %s6
  $region1: #{fc_forward.1} parent=0
    #allocation3 [shape = 'u8[512]{0}', space=vmem, size = 0x400, scoped, tag = 'output window, operand 0, single buffered']
    #allocation4 [shape = 's32[1]{0}', space=sflag, size = 0x4, scoped, tag = 'scoped memory for fc_forward.1']
    %10 = vsyncpa [#allocation4], 0
    // Predicated region
    $region2: #{fc_forward.1} parent=1 // pred_check
      _
    $region3: #{fc_forward.1} parent=1 // pred_check_branch
      %12 = sbr.rel (0) target = $region5
    $region4: #{fc_forward.1} parent=1 // pred_region
      _
    $region5: #{fc_forward.1} parent=1 // pred_fallthru
      _
    // Predicated region
    $region6: #{fc_forward.1} parent=1 // pred_check
      _
    $region7: #{fc_forward.1} parent=1 // pred_check_branch
      %14 = sbr.rel (0) target = $region9
    $region8: #{fc_forward.1} parent=1 // pred_region
      _
    $region9: #{fc_forward.1} parent=1 // pred_fallthru
      _
    // Predicated region
    $region10: #{fc_forward.1} parent=1 // pred_check
      _
    $region11: #{fc_forward.1} parent=1 // pred_check_branch
      %16 = sbr.rel (0) target = $region13
    $region12: #{fc_forward.1} parent=1 // pred_region
      _
    $region13: #{fc_forward.1} parent=1 // pred_fallthru
      _
    // Predicated region
    $region14: #{fc_forward.1} parent=1 // pred_check
      _
    $region15: #{fc_forward.1} parent=1 // pred_check_branch
      %18 = sbr.rel (0) target = $region17
    $region16: #{fc_forward.1} parent=1 // pred_region
      _
    $region17: #{fc_forward.1} parent=1 // pred_fallthru
      _
    // Predicated region
    $region18: #{fc_forward.1} parent=1 // pred_check
      _
    $region19: #{fc_forward.1} parent=1 // pred_check_branch
      %20 = sbr.rel (0) target = $region21
    $region20: #{fc_forward.1} parent=1 // pred_region
      _
    $region21: #{fc_forward.1} parent=1 // pred_fallthru
      _
    %p21 = scmp.eq.s32.totalorder 0, 0
    // Predicated region
    $region22: #{fc_forward.1} parent=1 // pred_check
      %p22 = pneg %p21
    $region23: #{fc_forward.1} parent=1 // pred_check_branch
      %24 = sbr.rel (%p22) target = $region25
    $region24: #{fc_forward.1} parent=1 // pred_region
      %vm25 = vcmask 57344
      %26 = vst.msk [vmem:[#allocation2] sm:$0x1] %vm25, 0.0
    $region25: #{fc_forward.1} parent=1 // pred_fallthru
      _
    %v27 = vld [vmem:[%s0] sm:$0xff]
    %v28 = vld [vmem:[%s0 + $0x8] sm:$0xff]
    %v29 = vld [vmem:[#allocation2] sm:$0x1]
    %30 = vmatprep.subr.mxu0 0.0
    %31 = vmatpush1.xpose.msra.mxu0 0.0
    %32 = vmatprep.subr.mxu0 0.0
    %33 = vmatpush1.xpose.msra.mxu0 0.0
    %34 = vmatprep.subr.mxu0 0.0
    %35 = vmatpush1.xpose.msra.mxu0 0.0
    %36 = vmatprep.subr.mxu0 0.0
    %37 = vmatpush1.xpose.msra.mxu0 0.0
    %38 = vmatprep.subr.mxu0 0.0
    %39 = vmatpush1.xpose.msra.mxu0 0.0
    %40 = vmatprep.subr.mxu0 0.0
    %41 = vmatpush1.xpose.msra.mxu0 0.0
    %42 = vmatprep.subr.mxu0 0.0
    %43 = vmatpush1.xpose.msra.mxu0 0.0
    %44 = vmatprep.subr.mxu0 0.0
    %45 = vmatpush1.xpose.msra.mxu0 0.0
    %46 = vmatprep.subr.mxu0 0.0
    %47 = vmatpush1.xpose.msra.mxu0 0.0
    %48 = vmatprep.subr.mxu0 0.0
    %49 = vmatpush1.xpose.msra.mxu0 0.0
    %50 = vmatprep.subr.mxu0 0.0
    %51 = vmatpush1.xpose.msra.mxu0 0.0
    %52 = vmatprep.subr.mxu0 0.0
    %53 = vmatpush1.xpose.msra.mxu0 0.0
    %54 = vmatprep.subr.mxu0 0.0
    %55 = vmatpush1.xpose.msra.mxu0 0.0
    %56 = vmatprep.subr.mxu0 0.0
    %57 = vmatpush1.xpose.msra.mxu0 0.0
    %58 = vmatprep.subr.mxu0 0.0
    %59 = vmatpush1.xpose.msra.mxu0 0.0
    %60 = vmatprep.subr.mxu0 %v28
    %61 = vmatpush1.xpose.msra.mxu0 %v27
    %62 = vmatprep.subr.mxu0 0.0
    %63 = vmatpush2.xpose.msra.mxu0 0.0
    %64 = vmatprep.subr.mxu0 0.0
    %65 = vmatpush2.xpose.msra.mxu0 0.0
    %66 = vmatprep.subr.mxu0 0.0
    %67 = vmatpush2.xpose.msra.mxu0 0.0
    %68 = vmatprep.subr.mxu0 0.0
    %69 = vmatpush2.xpose.msra.mxu0 0.0
    %70 = vmatprep.subr.mxu0 0.0
    %71 = vmatpush2.xpose.msra.mxu0 0.0
    %72 = vmatprep.subr.mxu0 0.0
    %73 = vmatpush2.xpose.msra.mxu0 0.0
    %74 = vmatprep.subr.mxu0 0.0
    %75 = vmatpush2.xpose.msra.mxu0 0.0
    %76 = vmatprep.subr.mxu0 0.0
    %77 = vmatpush2.xpose.msra.mxu0 0.0
    %78 = vmatprep.subr.mxu0 0.0
    %79 = vmatpush2.xpose.msra.mxu0 0.0
    %80 = vmatprep.subr.mxu0 0.0
    %81 = vmatpush2.xpose.msra.mxu0 0.0
    %82 = vmatprep.subr.mxu0 0.0
    %83 = vmatpush2.xpose.msra.mxu0 0.0
    %84 = vmatprep.subr.mxu0 0.0
    %85 = vmatpush2.xpose.msra.mxu0 0.0
    %86 = vmatprep.subr.mxu0 0.0
    %87 = vmatpush2.xpose.msra.mxu0 0.0
    %88 = vmatprep.subr.mxu0 0.0
    %89 = vmatpush2.xpose.msra.mxu0 0.0
    %90 = vmatprep.subr.mxu0 0.0
    %91 = vmatpush2.xpose.msra.mxu0 0.0
    %92 = vmatprep.subr.mxu0 0.0
    %93 = vmatpush2.xpose.msra.mxu0 0.0
    %94 = vmatprep.mubr.f32.mxu0 1.0
    %95 = vmatmul.mubr.f32.gmra.mxu0 1.0
    %v96 = vpop.f32.mrf.mxu0
    %v97 = vadd.f32 0.0, %v96
    %v98 = vpop.f32.mrf.mxu0
    %99 = vdwg.mxu0
    %v100 = vadd.f32 %v29, %v97
    %vm101 = vcmask 57344
    %102 = vst.msk [vmem:[#allocation2] sm:$0x1] %vm101, %v100
    // Predicated region
    $region26: #{fc_forward.1} parent=1 // pred_check
      %p103 = pneg %p21
    $region27: #{fc_forward.1} parent=1 // pred_check_branch
      %105 = sbr.rel (%p103) target = $region29
    $region28: #{fc_forward.1} parent=1 // pred_region
      %v106 = vld [vmem:[#allocation2] sm:$0x1]
      %v107 = vmul.f32 %v106, 0.00390625
      %v108 = vld [vmem:[%s1] sm:$0xff]
      %v109 = vld [vmem:[%s2] sm:$0x1]
      %vm110 = vcmask 64512
      %v112 = vsel %vm110, %v107, 0
      %114 = vmatprep.subr.mxu0 0.0
      %115 = vmatpush1.msra.mxu0 0.0
      %116 = vmatprep.subr.mxu0 0.0
      %117 = vmatpush1.msra.mxu0 0.0
      %118 = vmatprep.subr.mxu0 0.0
      %119 = vmatpush1.msra.mxu0 0.0
      %120 = vmatprep.subr.mxu0 0.0
      %121 = vmatpush1.msra.mxu0 0.0
      %122 = vmatprep.subr.mxu0 0.0
      %123 = vmatpush1.msra.mxu0 0.0
      %124 = vmatprep.subr.mxu0 0.0
      %125 = vmatpush1.msra.mxu0 0.0
      %126 = vmatprep.subr.mxu0 0.0
      %127 = vmatpush1.msra.mxu0 0.0
      %128 = vmatprep.subr.mxu0 0.0
      %129 = vmatpush1.msra.mxu0 0.0
      %130 = vmatprep.subr.mxu0 0.0
      %131 = vmatpush1.msra.mxu0 0.0
      %132 = vmatprep.subr.mxu0 0.0
      %133 = vmatpush1.msra.mxu0 0.0
      %134 = vmatprep.subr.mxu0 0.0
      %135 = vmatpush1.msra.mxu0 0.0
      %136 = vmatprep.subr.mxu0 0.0
      %137 = vmatpush1.msra.mxu0 0.0
      %138 = vmatprep.subr.mxu0 0.0
      %139 = vmatpush1.msra.mxu0 0.0
      %140 = vmatprep.subr.mxu0 0.0
      %141 = vmatpush1.msra.mxu0 0.0
      %142 = vmatprep.subr.mxu0 0.0
      %143 = vmatpush1.msra.mxu0 0.0
      %144 = vmatprep.subr.mxu0 0.0
      %145 = vmatpush1.msra.mxu0 %v108
      %146 = vmatprep.subr.mxu0 0.0
      %147 = vmatpush2.msra.mxu0 0.0
      %148 = vmatprep.subr.mxu0 0.0
      %149 = vmatpush2.msra.mxu0 0.0
      %150 = vmatprep.subr.mxu0 0.0
      %151 = vmatpush2.msra.mxu0 0.0
      %152 = vmatprep.subr.mxu0 0.0
      %153 = vmatpush2.msra.mxu0 0.0
      %154 = vmatprep.subr.mxu0 0.0
      %155 = vmatpush2.msra.mxu0 0.0
      %156 = vmatprep.subr.mxu0 0.0
      %157 = vmatpush2.msra.mxu0 0.0
      %158 = vmatprep.subr.mxu0 0.0
      %159 = vmatpush2.msra.mxu0 0.0
      %160 = vmatprep.subr.mxu0 0.0
      %161 = vmatpush2.msra.mxu0 0.0
      %162 = vmatprep.subr.mxu0 0.0
      %163 = vmatpush2.msra.mxu0 0.0
      %164 = vmatprep.subr.mxu0 0.0
      %165 = vmatpush2.msra.mxu0 0.0
      %166 = vmatprep.subr.mxu0 0.0
      %167 = vmatpush2.msra.mxu0 0.0
      %168 = vmatprep.subr.mxu0 0.0
      %169 = vmatpush2.msra.mxu0 0.0
      %170 = vmatprep.subr.mxu0 0.0
      %171 = vmatpush2.msra.mxu0 0.0
      %172 = vmatprep.subr.mxu0 0.0
      %173 = vmatpush2.msra.mxu0 0.0
      %174 = vmatprep.subr.mxu0 0.0
      %175 = vmatpush2.msra.mxu0 0.0
      %176 = vmatprep.subr.mxu0 0.0
      %177 = vmatpush2.msra.mxu0 0.0
      %178 = vmatprep.mubr.f32.mxu0 0.0
      %179 = vmatmul.mubr.f32.gmra.mxu0 %v112
      %v180 = vpop.f32.mrf.mxu0
      %v181 = vadd.f32 %v109, %v180
      %v182 = vpop.f32.mrf.mxu0
      %183 = vdwg.mxu0
      %v184 = vmax.f32 %v181, 0.0
      %v185 = vld [vmem:[%s3] sm:$0xff]
      %v186 = vld [vmem:[%s3 + $0x8] sm:$0xff]
      %v187 = vld [vmem:[%s3 + $0x10] sm:$0xff]
      %v188 = vld [vmem:[%s3 + $0x18] sm:$0xff]
      %v189 = vld [vmem:[%s3 + $0x20] sm:$0xff]
      %v190 = vld [vmem:[%s3 + $0x28] sm:$0xff]
      %v191 = vld [vmem:[%s3 + $0x30] sm:$0xff]
      %v192 = vld [vmem:[%s3 + $0x38] sm:$0xff]
      %v193 = vld [vmem:[%s3 + $0x40] sm:$0xff]
      %v194 = vld [vmem:[%s3 + $0x48] sm:$0xff]
      %v195 = vld [vmem:[%s3 + $0x50] sm:$0xff]
      %v196 = vld [vmem:[%s3 + $0x58] sm:$0xff]
      %v197 = vld [vmem:[%s3 + $0x60] sm:$0xff]
      %v198 = vld [vmem:[%s3 + $0x68] sm:$0xff]
      %v199 = vld [vmem:[%s3 + $0x70] sm:$0xff]
      %v200 = vld [vmem:[%s3 + $0x78] sm:$0xff]
      %v201 = vld [vmem:[%s4] sm:$0x1]
      %202 = vmatprep.subr.mxu0 0.0
      %203 = vmatpush1.msra.mxu0 %v200
      %204 = vmatprep.subr.mxu0 0.0
      %205 = vmatpush1.msra.mxu0 %v199
      %206 = vmatprep.subr.mxu0 0.0
      %207 = vmatpush1.msra.mxu0 %v198
      %208 = vmatprep.subr.mxu0 0.0
      %209 = vmatpush1.msra.mxu0 %v197
      %210 = vmatprep.subr.mxu0 0.0
      %211 = vmatpush1.msra.mxu0 %v196
      %212 = vmatprep.subr.mxu0 0.0
      %213 = vmatpush1.msra.mxu0 %v195
      %214 = vmatprep.subr.mxu0 0.0
      %215 = vmatpush1.msra.mxu0 %v194
      %216 = vmatprep.subr.mxu0 0.0
      %217 = vmatpush1.msra.mxu0 %v193
      %218 = vmatprep.subr.mxu0 0.0
      %219 = vmatpush1.msra.mxu0 %v192
      %220 = vmatprep.subr.mxu0 0.0
      %221 = vmatpush1.msra.mxu0 %v191
      %222 = vmatprep.subr.mxu0 0.0
      %223 = vmatpush1.msra.mxu0 %v190
      %224 = vmatprep.subr.mxu0 0.0
      %225 = vmatpush1.msra.mxu0 %v189
      %226 = vmatprep.subr.mxu0 0.0
      %227 = vmatpush1.msra.mxu0 %v188
      %228 = vmatprep.subr.mxu0 0.0
      %229 = vmatpush1.msra.mxu0 %v187
      %230 = vmatprep.subr.mxu0 0.0
      %231 = vmatpush1.msra.mxu0 %v186
      %232 = vmatprep.subr.mxu0 0.0
      %233 = vmatpush1.msra.mxu0 %v185
      %234 = vmatprep.subr.mxu0 0.0
      %235 = vmatpush2.msra.mxu0 0.0
      %236 = vmatprep.subr.mxu0 0.0
      %237 = vmatpush2.msra.mxu0 0.0
      %238 = vmatprep.subr.mxu0 0.0
      %239 = vmatpush2.msra.mxu0 0.0
      %240 = vmatprep.subr.mxu0 0.0
      %241 = vmatpush2.msra.mxu0 0.0
      %242 = vmatprep.subr.mxu0 0.0
      %243 = vmatpush2.msra.mxu0 0.0
      %244 = vmatprep.subr.mxu0 0.0
      %245 = vmatpush2.msra.mxu0 0.0
      %246 = vmatprep.subr.mxu0 0.0
      %247 = vmatpush2.msra.mxu0 0.0
      %248 = vmatprep.subr.mxu0 0.0
      %249 = vmatpush2.msra.mxu0 0.0
      %250 = vmatprep.subr.mxu0 0.0
      %251 = vmatpush2.msra.mxu0 0.0
      %252 = vmatprep.subr.mxu0 0.0
      %253 = vmatpush2.msra.mxu0 0.0
      %254 = vmatprep.subr.mxu0 0.0
      %255 = vmatpush2.msra.mxu0 0.0
      %256 = vmatprep.subr.mxu0 0.0
      %257 = vmatpush2.msra.mxu0 0.0
      %258 = vmatprep.subr.mxu0 0.0
      %259 = vmatpush2.msra.mxu0 0.0
      %260 = vmatprep.subr.mxu0 0.0
      %261 = vmatpush2.msra.mxu0 0.0
      %262 = vmatprep.subr.mxu0 0.0
      %263 = vmatpush2.msra.mxu0 0.0
      %264 = vmatprep.subr.mxu0 0.0
      %265 = vmatpush2.msra.mxu0 0.0
      %266 = vmatprep.mubr.f32.mxu0 0.0
      %267 = vmatmul.mubr.f32.gmra.mxu0 %v184
      %v268 = vpop.f32.mrf.mxu0
      %v269 = vadd.f32 %v201, %v268
      %v270 = vpop.f32.mrf.mxu0
      %271 = vdwg.mxu0
      %272 = vst [vmem:[#allocation3] sm:$0x1] %v269
    $region29: #{fc_forward.1} parent=1 // pred_fallthru
      _
    // Predicated region
    $region30: #{fc_forward.1} parent=1 // pred_check
      _
    $region31: #{fc_forward.1} parent=1 // pred_check_branch
      %274 = sbr.rel (0) target = $region33
    $region32: #{fc_forward.1} parent=1 // pred_region
      %s276 = ssub.s32 16, 16
      %277 = vsyncadd [#allocation4], %s276
      %s279 = sshll.u32 [#allocation3], 4
      %s280 = int_to_ptr.vmem [resolvable:$true] %s279
      %282 = dma.vmem_to_hbm [thread:$0]  %s280, 16, %s5, [#allocation4]
    $region33: #{fc_forward.1} parent=1 // pred_fallthru
      _
    // Predicated region
    $region34: #{fc_forward.1} parent=1 // pred_check
      _
    $region35: #{fc_forward.1} parent=1 // pred_check_branch
      %284 = sbr.rel (0) target = $region37
    $region36: #{fc_forward.1} parent=1 // pred_region
      %285 = dma.done [#allocation4], 16
    $region37: #{fc_forward.1} parent=1 // pred_fallthru
      _
    %286 = vsyncpa [#allocation4], 1

// kernel: fc_forward.1
$region0: #{fc_forward.1}
  #allocation0 [shape = 'u32[]', space=smem, size = 0x4, offset = 0x4, fixed_abs, tag = 'smem constant byte address 0x4 - core index']
  #allocation1 [shape = 'u32[144,128]{1,0:T(1,128)}', space=vmem, size = 0x12000, scoped, tag = 'internal scratch']
  #allocation2 [shape = 'f32[1,8]{1,0:T(1,128)}', space=vmem, size = 0x200, scoped, tag = 'scratch operand']
  %s0 = inlined_call_operand.vmem [shape: f32[8,256], index: 0, kind: input, shape index: {}]
  %s1 = inlined_call_operand.vmem [shape: f32[8,128], index: 1, kind: input, shape index: {}]
  %s2 = inlined_call_operand.vmem [shape: f32[1,128], index: 2, kind: input, shape index: {}]
  %s3 = inlined_call_operand.vmem [shape: f32[128,128], index: 3, kind: input, shape index: {}]
  %s4 = inlined_call_operand.vmem [shape: f32[1,128], index: 4, kind: input, shape index: {}]
  %s5 = inlined_call_operand.hbm [shape: f32[1,128], index: 5, kind: output, shape index: {}]
  %s6 = sld [smem:[#allocation0]]
  $region38: #{fc_forward.1} parent=0
    _
  %s8 = ssub.s32 1, %s6
  %s9 = scalar_select 0, %s8, %s6
  $region1: #{fc_forward.1} parent=0
    #allocation3 [shape = 'u8[512]{0}', space=vmem, size = 0x400, scoped, tag = 'output window, operand 0, single buffered']
    #allocation4 [shape = 's32[1]{0}', space=sflag, size = 0x4, scoped, tag = 'scoped memory for fc_forward.1']
    %10 = vsyncpa [#allocation4], 0
    // Predicated region
    $region2: #{fc_forward.1} parent=1 // pred_check
      _
    $region3: #{fc_forward.1} parent=1 // pred_check_branch
      %12 = sbr.rel (0) target = $region5
    $region4: #{fc_forward.1} parent=1 // pred_region
      _
    $region5: #{fc_forward.1} parent=1 // pred_fallthru
      _
    // Predicated region
    $region6: #{fc_forward.1} parent=1 // pred_check
      _
    $region7: #{fc_forward.1} parent=1 // pred_check_branch
      %14 = sbr.rel (0) target = $region9
    $region8: #{fc_forward.1} parent=1 // pred_region
      _
    $region9: #{fc_forward.1} parent=1 // pred_fallthru
      _
    // Predicated region
    $region10: #{fc_forward.1} parent=1 // pred_check
      _
    $region11: #{fc_forward.1} parent=1 // pred_check_branch
      %16 = sbr.rel (0) target = $region13
    $region12: #{fc_forward.1} parent=1 // pred_region
      _
    $region13: #{fc_forward.1} parent=1 // pred_fallthru
      _
    // Predicated region
    $region14: #{fc_forward.1} parent=1 // pred_check
      _
    $region15: #{fc_forward.1} parent=1 // pred_check_branch
      %18 = sbr.rel (0) target = $region17
    $region16: #{fc_forward.1} parent=1 // pred_region
      _
    $region17: #{fc_forward.1} parent=1 // pred_fallthru
      _
    // Predicated region
    $region18: #{fc_forward.1} parent=1 // pred_check
      _
    $region19: #{fc_forward.1} parent=1 // pred_check_branch
      %20 = sbr.rel (0) target = $region21
    $region20: #{fc_forward.1} parent=1 // pred_region
      _
    $region21: #{fc_forward.1} parent=1 // pred_fallthru
      _
    %p21 = scmp.eq.s32.totalorder 0, 0
    // Predicated region
    $region22: #{fc_forward.1} parent=1 // pred_check
      %p22 = pneg %p21
    $region23: #{fc_forward.1} parent=1 // pred_check_branch
      %24 = sbr.rel (%p22) target = $region25
    $region24: #{fc_forward.1} parent=1 // pred_region
      %vm25 = vcmask 57344
      %26 = vst.msk [vmem:[#allocation2] sm:$0x1] %vm25, 0.0
    $region25: #{fc_forward.1} parent=1 // pred_fallthru
      _
    %v27 = vld [vmem:[%s0] sm:$0xff]
    %v28 = vld [vmem:[%s0 + $0x8] sm:$0xff]
    %v29 = vld [vmem:[#allocation2] sm:$0x1]
    %30 = vmatprep.subr.mxu0 0.0
    %31 = vmatpush1.xpose.msra.mxu0 0.0
    %32 = vmatprep.subr.mxu0 0.0
    %33 = vmatpush1.xpose.msra.mxu0 0.0
    %34 = vmatprep.subr.mxu0 0.0
    %35 = vmatpush1.xpose.msra.mxu0 0.0
    %36 = vmatprep.subr.mxu0 0.0
    %37 = vmatpush1.xpose.msra.mxu0 0.0
    %38 = vmatprep.subr.mxu0 0.0
    %39 = vmatpush1.xpose.msra.mxu0 0.0
    %40 = vmatprep.subr.mxu0 0.0
    %41 = vmatpush1.xpose.msra.mxu0 0.0
    %42 = vmatprep.subr.mxu0 0.0
    %43 = vmatpush1.xpose.msra.mxu0 0.0
    %44 = vmatprep.subr.mxu0 0.0
    %45 = vmatpush1.xpose.msra.mxu0 0.0
    %46 = vmatprep.subr.mxu0 0.0
    %47 = vmatpush1.xpose.msra.mxu0 0.0
    %48 = vmatprep.subr.mxu0 0.0
    %49 = vmatpush1.xpose.msra.mxu0 0.0
    %50 = vmatprep.subr.mxu0 0.0
    %51 = vmatpush1.xpose.msra.mxu0 0.0
    %52 = vmatprep.subr.mxu0 0.0
    %53 = vmatpush1.xpose.msra.mxu0 0.0
    %54 = vmatprep.subr.mxu0 0.0
    %55 = vmatpush1.xpose.msra.mxu0 0.0
    %56 = vmatprep.subr.mxu0 0.0
    %57 = vmatpush1.xpose.msra.mxu0 0.0
    %58 = vmatprep.subr.mxu0 0.0
    %59 = vmatpush1.xpose.msra.mxu0 0.0
    %60 = vmatprep.subr.mxu0 %v28
    %61 = vmatpush1.xpose.msra.mxu0 %v27
    %62 = vmatprep.subr.mxu0 0.0
    %63 = vmatpush2.xpose.msra.mxu0 0.0
    %64 = vmatprep.subr.mxu0 0.0
    %65 = vmatpush2.xpose.msra.mxu0 0.0
    %66 = vmatprep.subr.mxu0 0.0
    %67 = vmatpush2.xpose.msra.mxu0 0.0
    %68 = vmatprep.subr.mxu0 0.0
    %69 = vmatpush2.xpose.msra.mxu0 0.0
    %70 = vmatprep.subr.mxu0 0.0
    %71 = vmatpush2.xpose.msra.mxu0 0.0
    %72 = vmatprep.subr.mxu0 0.0
    %73 = vmatpush2.xpose.msra.mxu0 0.0
    %74 = vmatprep.subr.mxu0 0.0
    %75 = vmatpush2.xpose.msra.mxu0 0.0
    %76 = vmatprep.subr.mxu0 0.0
    %77 = vmatpush2.xpose.msra.mxu0 0.0
    %78 = vmatprep.subr.mxu0 0.0
    %79 = vmatpush2.xpose.msra.mxu0 0.0
    %80 = vmatprep.subr.mxu0 0.0
    %81 = vmatpush2.xpose.msra.mxu0 0.0
    %82 = vmatprep.subr.mxu0 0.0
    %83 = vmatpush2.xpose.msra.mxu0 0.0
    %84 = vmatprep.subr.mxu0 0.0
    %85 = vmatpush2.xpose.msra.mxu0 0.0
    %86 = vmatprep.subr.mxu0 0.0
    %87 = vmatpush2.xpose.msra.mxu0 0.0
    %88 = vmatprep.subr.mxu0 0.0
    %89 = vmatpush2.xpose.msra.mxu0 0.0
    %90 = vmatprep.subr.mxu0 0.0
    %91 = vmatpush2.xpose.msra.mxu0 0.0
    %92 = vmatprep.subr.mxu0 0.0
    %93 = vmatpush2.xpose.msra.mxu0 0.0
    %94 = vmatprep.mubr.f32.mxu0 1.0
    %95 = vmatmul.mubr.f32.gmra.mxu0 1.0
    %v96 = vpop.f32.mrf.mxu0
    %v97 = vadd.f32 0.0, %v96
    %v98 = vpop.f32.mrf.mxu0
    %99 = vdwg.mxu0
    %v100 = vadd.f32 %v29, %v97
    %vm101 = vcmask 57344
    %102 = vst.msk [vmem:[#allocation2] sm:$0x1] %vm101, %v100
    // Predicated region
    $region26: #{fc_forward.1} parent=1 // pred_check
      %p103 = pneg %p21
    $region27: #{fc_forward.1} parent=1 // pred_check_branch
      %105 = sbr.rel (%p103) target = $region29
    $region28: #{fc_forward.1} parent=1 // pred_region
      %v106 = vld [vmem:[#allocation2] sm:$0x1]
      %v107 = vmul.f32 %v106, 0.00390625
      %v108 = vld [vmem:[%s1] sm:$0xff]
      %v109 = vld [vmem:[%s2] sm:$0x1]
      %vm110 = vcmask 64512
      %v112 = vsel %vm110, %v107, 0
      %114 = vmatprep.subr.mxu0 0.0
      %115 = vmatpush1.msra.mxu0 0.0
      %116 = vmatprep.subr.mxu0 0.0
      %117 = vmatpush1.msra.mxu0 0.0
      %118 = vmatprep.subr.mxu0 0.0
      %119 = vmatpush1.msra.mxu0 0.0
      %120 = vmatprep.subr.mxu0 0.0
      %121 = vmatpush1.msra.mxu0 0.0
      %122 = vmatprep.subr.mxu0 0.0
      %123 = vmatpush1.msra.mxu0 0.0
      %124 = vmatprep.subr.mxu0 0.0
      %125 = vmatpush1.msra.mxu0 0.0
      %126 = vmatprep.subr.mxu0 0.0
      %127 = vmatpush1.msra.mxu0 0.0
      %128 = vmatprep.subr.mxu0 0.0
      %129 = vmatpush1.msra.mxu0 0.0
      %130 = vmatprep.subr.mxu0 0.0
      %131 = vmatpush1.msra.mxu0 0.0
      %132 = vmatprep.subr.mxu0 0.0
      %133 = vmatpush1.msra.mxu0 0.0
      %134 = vmatprep.subr.mxu0 0.0
      %135 = vmatpush1.msra.mxu0 0.0
      %136 = vmatprep.subr.mxu0 0.0
      %137 = vmatpush1.msra.mxu0 0.0
      %138 = vmatprep.subr.mxu0 0.0
      %139 = vmatpush1.msra.mxu0 0.0
      %140 = vmatprep.subr.mxu0 0.0
      %141 = vmatpush1.msra.mxu0 0.0
      %142 = vmatprep.subr.mxu0 0.0
      %143 = vmatpush1.msra.mxu0 0.0
      %144 = vmatprep.subr.mxu0 0.0
      %145 = vmatpush1.msra.mxu0 %v108
      %146 = vmatprep.subr.mxu0 0.0
      %147 = vmatpush2.msra.mxu0 0.0
      %148 = vmatprep.subr.mxu0 0.0
      %149 = vmatpush2.msra.mxu0 0.0
      %150 = vmatprep.subr.mxu0 0.0
      %151 = vmatpush2.msra.mxu0 0.0
      %152 = vmatprep.subr.mxu0 0.0
      %153 = vmatpush2.msra.mxu0 0.0
      %154 = vmatprep.subr.mxu0 0.0
      %155 = vmatpush2.msra.mxu0 0.0
      %156 = vmatprep.subr.mxu0 0.0
      %157 = vmatpush2.msra.mxu0 0.0
      %158 = vmatprep.subr.mxu0 0.0
      %159 = vmatpush2.msra.mxu0 0.0
      %160 = vmatprep.subr.mxu0 0.0
      %161 = vmatpush2.msra.mxu0 0.0
      %162 = vmatprep.subr.mxu0 0.0
      %163 = vmatpush2.msra.mxu0 0.0
      %164 = vmatprep.subr.mxu0 0.0
      %165 = vmatpush2.msra.mxu0 0.0
      %166 = vmatprep.subr.mxu0 0.0
      %167 = vmatpush2.msra.mxu0 0.0
      %168 = vmatprep.subr.mxu0 0.0
      %169 = vmatpush2.msra.mxu0 0.0
      %170 = vmatprep.subr.mxu0 0.0
      %171 = vmatpush2.msra.mxu0 0.0
      %172 = vmatprep.subr.mxu0 0.0
      %173 = vmatpush2.msra.mxu0 0.0
      %174 = vmatprep.subr.mxu0 0.0
      %175 = vmatpush2.msra.mxu0 0.0
      %176 = vmatprep.subr.mxu0 0.0
      %177 = vmatpush2.msra.mxu0 0.0
      %178 = vmatprep.mubr.f32.mxu0 0.0
      %179 = vmatmul.mubr.f32.gmra.mxu0 %v112
      %v180 = vpop.f32.mrf.mxu0
      %v181 = vadd.f32 %v109, %v180
      %v182 = vpop.f32.mrf.mxu0
      %183 = vdwg.mxu0
      %v184 = vmax.f32 %v181, 0.0
      %v185 = vld [vmem:[%s3] sm:$0xff]
      %v186 = vld [vmem:[%s3 + $0x8] sm:$0xff]
      %v187 = vld [vmem:[%s3 + $0x10] sm:$0xff]
      %v188 = vld [vmem:[%s3 + $0x18] sm:$0xff]
      %v189 = vld [vmem:[%s3 + $0x20] sm:$0xff]
      %v190 = vld [vmem:[%s3 + $0x28] sm:$0xff]
      %v191 = vld [vmem:[%s3 + $0x30] sm:$0xff]
      %v192 = vld [vmem:[%s3 + $0x38] sm:$0xff]
      %v193 = vld [vmem:[%s3 + $0x40] sm:$0xff]
      %v194 = vld [vmem:[%s3 + $0x48] sm:$0xff]
      %v195 = vld [vmem:[%s3 + $0x50] sm:$0xff]
      %v196 = vld [vmem:[%s3 + $0x58] sm:$0xff]
      %v197 = vld [vmem:[%s3 + $0x60] sm:$0xff]
      %v198 = vld [vmem:[%s3 + $0x68] sm:$0xff]
      %v199 = vld [vmem:[%s3 + $0x70] sm:$0xff]
      %v200 = vld [vmem:[%s3 + $0x78] sm:$0xff]
      %v201 = vld [vmem:[%s4] sm:$0x1]
      %202 = vmatprep.subr.mxu0 0.0
      %203 = vmatpush1.msra.mxu0 %v200
      %204 = vmatprep.subr.mxu0 0.0
      %205 = vmatpush1.msra.mxu0 %v199
      %206 = vmatprep.subr.mxu0 0.0
      %207 = vmatpush1.msra.mxu0 %v198
      %208 = vmatprep.subr.mxu0 0.0
      %209 = vmatpush1.msra.mxu0 %v197
      %210 = vmatprep.subr.mxu0 0.0
      %211 = vmatpush1.msra.mxu0 %v196
      %212 = vmatprep.subr.mxu0 0.0
      %213 = vmatpush1.msra.mxu0 %v195
      %214 = vmatprep.subr.mxu0 0.0
      %215 = vmatpush1.msra.mxu0 %v194
      %216 = vmatprep.subr.mxu0 0.0
      %217 = vmatpush1.msra.mxu0 %v193
      %218 = vmatprep.subr.mxu0 0.0
      %219 = vmatpush1.msra.mxu0 %v192
      %220 = vmatprep.subr.mxu0 0.0
      %221 = vmatpush1.msra.mxu0 %v191
      %222 = vmatprep.subr.mxu0 0.0
      %223 = vmatpush1.msra.mxu0 %v190
      %224 = vmatprep.subr.mxu0 0.0
      %225 = vmatpush1.msra.mxu0 %v189
      %226 = vmatprep.subr.mxu0 0.0
      %227 = vmatpush1.msra.mxu0 %v188
      %228 = vmatprep.subr.mxu0 0.0
      %229 = vmatpush1.msra.mxu0 %v187
      %230 = vmatprep.subr.mxu0 0.0
      %231 = vmatpush1.msra.mxu0 %v186
      %232 = vmatprep.subr.mxu0 0.0
      %233 = vmatpush1.msra.mxu0 %v185
      %234 = vmatprep.subr.mxu0 0.0
      %235 = vmatpush2.msra.mxu0 0.0
      %236 = vmatprep.subr.mxu0 0.0
      %237 = vmatpush2.msra.mxu0 0.0
      %238 = vmatprep.subr.mxu0 0.0
      %239 = vmatpush2.msra.mxu0 0.0
      %240 = vmatprep.subr.mxu0 0.0
      %241 = vmatpush2.msra.mxu0 0.0
      %242 = vmatprep.subr.mxu0 0.0
      %243 = vmatpush2.msra.mxu0 0.0
      %244 = vmatprep.subr.mxu0 0.0
      %245 = vmatpush2.msra.mxu0 0.0
      %246 = vmatprep.subr.mxu0 0.0
      %247 = vmatpush2.msra.mxu0 0.0
      %248 = vmatprep.subr.mxu0 0.0
      %249 = vmatpush2.msra.mxu0 0.0
      %250 = vmatprep.subr.mxu0 0.0
      %251 = vmatpush2.msra.mxu0 0.0
      %252 = vmatprep.subr.mxu0 0.0
      %253 = vmatpush2.msra.mxu0 0.0
      %254 = vmatprep.subr.mxu0 0.0
      %255 = vmatpush2.msra.mxu0 0.0
      %256 = vmatprep.subr.mxu0 0.0
      %257 = vmatpush2.msra.mxu0 0.0
      %258 = vmatprep.subr.mxu0 0.0
      %259 = vmatpush2.msra.mxu0 0.0
      %260 = vmatprep.subr.mxu0 0.0
      %261 = vmatpush2.msra.mxu0 0.0
      %262 = vmatprep.subr.mxu0 0.0
      %263 = vmatpush2.msra.mxu0 0.0
      %264 = vmatprep.subr.mxu0 0.0
      %265 = vmatpush2.msra.mxu0 0.0
      %266 = vmatprep.mubr.f32.mxu0 0.0
      %267 = vmatmul.mubr.f32.gmra.mxu0 %v184
      %v268 = vpop.f32.mrf.mxu0
      %v269 = vadd.f32 %v201, %v268
      %v270 = vpop.f32.mrf.mxu0
      %271 = vdwg.mxu0
      %272 = vst [vmem:[#allocation3] sm:$0x1] %v269
    $region29: #{fc_forward.1} parent=1 // pred_fallthru
      _
    // Predicated region
    $region30: #{fc_forward.1} parent=1 // pred_check
      _
    $region31: #{fc_forward.1} parent=1 // pred_check_branch
      %274 = sbr.rel (0) target = $region33
    $region32: #{fc_forward.1} parent=1 // pred_region
      %s276 = ssub.s32 16, 16
      %277 = vsyncadd [#allocation4], %s276
      %s279 = sshll.u32 [#allocation3], 4
      %s280 = int_to_ptr.vmem [resolvable:$true] %s279
      %282 = dma.vmem_to_hbm [thread:$0]  %s280, 16, %s5, [#allocation4]
    $region33: #{fc_forward.1} parent=1 // pred_fallthru
      _
    // Predicated region
    $region34: #{fc_forward.1} parent=1 // pred_check
      _
    $region35: #{fc_forward.1} parent=1 // pred_check_branch
      %284 = sbr.rel (0) target = $region37
    $region36: #{fc_forward.1} parent=1 // pred_region
      %285 = dma.done [#allocation4], 16
    $region37: #{fc_forward.1} parent=1 // pred_fallthru
      _
    %286 = vsyncpa [#allocation4], 1

</llo_original>
